<compile_context>
chip_gen: v7x
topology: tpu7x:2x2x1
jax: 0.10.0
libtpu: 0.0.40
codegen_flags: <defaults>
</compile_context>

<pallas_src>
import functools

import numpy as np
import jax
import jax.numpy as jnp
from jax.experimental import pallas as pl
from jax.experimental.pallas import tpu as pltpu


def _cnn_kernel(x_ref, w1_ref, w2_ref, wl_ref, aux_ref, mask_ref, out_ref,
                *, B, S2, K, C, V, Fo, pad):
    f32 = jnp.float32
    NE = B * S2                         # rows per even/odd half == rows of pooled sequence
    mk = mask_ref[...]                  # (NE, 2*pad+1): column j is the validity mask for shift j-pad
    auxv = aux_ref[...]                 # (3, max(C,Fo)): [shift1 ; shift2 ; linear bias]

    def shiftmask(p, s):
        # p: (NE, C), rows ordered t-major / batch-minor. Returns p with each row r picking
        # up row (t+s, b); rows whose shifted position falls outside [0, S2) (which are exactly
        # the rows the whole-array roll would pollute across batch boundaries) are zeroed.
        if s == 0:
            return p
        p = pltpu.roll(p, (-s * B) % NE, axis=0)
        return p * mk[:, s + pad:s + pad + 1]

    # ---- conv1 (BN scale + conv bias folded): K shifted accumulating MXU dots ----
    x = x_ref[...]                                            # (2*NE, V): [even positions ; odd]
    h_e = jnp.zeros((NE, C), f32)                             # conv1 output at even positions
    h_o = jnp.zeros((NE, C), f32)                             # conv1 output at odd positions
    for dk in range(K):                                       # K is tiny & static
        d = dk - pad
        part = jnp.dot(x, w1_ref[dk * V:(dk + 1) * V, :],
                       preferred_element_type=f32)            # (2*NE, C)
        pf, po = part[:NE, :], part[NE:, :]
        if d % 2 == 0:                                        # even tap: stays within its half
            s = d // 2
            h_e = h_e + shiftmask(pf, s)
            h_o = h_o + shiftmask(po, s)
        else:                                                 # odd tap: halves swap
            s = (d - 1) // 2
            h_e = h_e + shiftmask(po, s)
            h_o = h_o + shiftmask(pf, s + 1)

    # ---- BN shift + ReLU + MaxPool1d(2): max of the two halves (relu(x+shift) is monotone) ----
    shift1 = auxv[0:1, 0:C]
    h1p = jnp.maximum(jnp.maximum(h_e, h_o) + shift1, 0.0)    # (NE, C)
    # TODO(synk): Dropout(p=0.2) -> identity (eval mode).

    # ---- conv2 (BN scale + conv bias folded): K shifted accumulating MXU dots ----
    h2 = jnp.zeros((NE, C), f32)
    for dk in range(K):
        d = dk - pad
        part2 = jnp.dot(h1p, w2_ref[dk * C:(dk + 1) * C, :],
                        preferred_element_type=f32)           # (NE, C)
        h2 = h2 + shiftmask(part2, d)
    shift2 = auxv[1:2, 0:C]
    h2 = jnp.maximum(h2 + shift2, 0.0)
    # Dropout -> identity (eval mode)

    # ---- MaxPool1d(S//2): per-batch global max via log2(S2) fold-in-half maxes (t-major rows) ----
    m = h2
    L = S2
    extra = None
    while L > 1:
        if L % 2 == 1:                                        # carry the odd leftover block
            last = m[(L - 1) * B:L * B, :]
            extra = last if extra is None else jnp.maximum(extra, last)
            L -= 1
        half = L // 2
        m = jnp.maximum(m[:half * B, :], m[half * B:L * B, :])
        L = half
    pooled = m if extra is None else jnp.maximum(m, extra)    # (B, C)

    # ---- Linear(C, F) + Softmax(dim=1), single (B, F) store ----
    blv = auxv[2:3, 0:Fo]
    logits = jnp.dot(pooled, wl_ref[...], preferred_element_type=f32) + blv
    z = logits - jnp.max(logits, axis=1, keepdims=True)
    e = jnp.exp(z)
    out_ref[...] = e * pl.reciprocal(jnp.sum(e, axis=1, keepdims=True), approx=True)


def prepare_params(params):
    """One-time, weight-only preprocessing (hoisted out of the per-call path)."""
    (w1, b1, w2, b2, wl, bl, gamma, beta, rmean, rvar, eps) = params
    C, _, K, V = w1.shape
    Fo = wl.shape[0]
    scale = (gamma / jnp.sqrt(rvar + eps)).astype(jnp.float32)          # BN (eval) scale
    shift = beta - rmean * scale
    # im2col weight layouts (tap dk = contiguous row block), BN scale folded into the weights
    w1s = (jnp.transpose(w1[:, 0, :, :], (1, 2, 0)).reshape(K * V, C) * scale).astype(jnp.float32)
    w2s = (jnp.transpose(w2, (2, 1, 0)).reshape(K * C, C) * scale).astype(jnp.float32)
    wlT = wl.T.astype(jnp.float32)
    # pack the tiny per-channel vectors into one operand: [shift1 ; shift2 ; linear bias]
    W = max(C, Fo)
    aux = jnp.zeros((3, W), jnp.float32)
    aux = aux.at[0, :C].set(b1 * scale + shift)
    aux = aux.at[1, :C].set(b2 * scale + shift)
    aux = aux.at[2, :Fo].set(bl)
    return (w1s, w2s, wlT, aux)


@jax.jit
def cnn_forward(x, prepped):
    w1s, w2s, wlT, aux = prepped
    B, S, V = x.shape
    KV, C = w1s.shape
    K = KV // V
    pad = K // 2
    Fo = wlT.shape[1]
    assert K % 2 == 1 and K * V == KV, "kernel width must be odd"
    assert S % 2 == 0, "sequence length must be even for MaxPool1d(2)"
    S2 = S // 2
    NE = B * S2
    assert pad <= S2

    # Layout plumbing (fused under jit, no FLOPs): even/odd sequence positions as two
    # contiguous halves, rows t-major / batch-minor, so every conv tap in the kernel is a
    # single whole-array roll and both max-pools are maxes of aligned slices.
    xe = jnp.transpose(x[:, 0::2, :], (1, 0, 2)).reshape(NE, V)
    xo = jnp.transpose(x[:, 1::2, :], (1, 0, 2)).reshape(NE, V)
    x_eo = jnp.concatenate([xe, xo], axis=0).astype(jnp.float32)        # (B*S, V)

    # Trace-time constant: per-shift validity masks (zero rows whose shifted position leaves
    # the sequence / would cross a batch boundary after the roll). Column j <-> shift j - pad.
    te = np.repeat(np.arange(S2), B)
    masks = jnp.asarray(np.stack(
        [((te + s >= 0) & (te + s < S2)).astype(np.float32) for s in range(-pad, pad + 1)],
        axis=1))                                                        # (NE, 2*pad+1)

    kernel = functools.partial(_cnn_kernel, B=B, S2=S2, K=K, C=C, V=V, Fo=Fo, pad=pad)
    vmem = pl.BlockSpec(memory_space=pltpu.MemorySpace.VMEM)
    # Gridless: all operands (< 20 KB) fit VMEM on v5e/v6e/v7x. If B/S/V grow, add a grid
    # over the row dimension ("parallel") and set vmem_limit_bytes explicitly for v7x.
    return pl.pallas_call(
        kernel,
        out_shape=jax.ShapeDtypeStruct((B, Fo), jnp.float32),
        in_specs=[vmem] * 6,
        out_specs=vmem,
    )(x_eo, w1s, w2s, wlT, aux, masks)


def cnn_pallas(x, params):
    return cnn_forward(x, prepare_params(params))


def cnn_reference(x, params):
    """Pure-JAX reference mirroring the PyTorch forward (eval mode)."""
    (w1, b1, w2, b2, wl, bl, gamma, beta, rmean, rvar, eps) = params
    K = w1.shape[2]
    pad = K // 2

    def bn(t):  # (B, C, L)
        return ((t - rmean[None, :, None]) / jnp.sqrt(rvar[None, :, None] + eps)
                * gamma[None, :, None] + beta[None, :, None])

    h = jax.lax.conv_general_dilated(
        x[:, None, :, :], w1, (1, 1), ((pad, pad), (0, 0)),
        dimension_numbers=('NCHW', 'OIHW', 'NCHW'),
        precision=jax.lax.Precision.HIGHEST)
    h = h[..., 0] + b1[None, :, None]                 # (B, C, S)
    h = jax.nn.relu(bn(h))
    Bb, Cc, Ss = h.shape
    h = h.reshape(Bb, Cc, Ss // 2, 2).max(axis=3)     # MaxPool1d(2)
    h2 = jax.lax.conv_general_dilated(
        h[:, :, None, :], w2[:, :, None, :], (1, 1), ((0, 0), (pad, pad)),
        dimension_numbers=('NCHW', 'OIHW', 'NCHW'),
        precision=jax.lax.Precision.HIGHEST)
    h2 = h2[:, :, 0, :] + b2[None, :, None]
    h2 = jax.nn.relu(bn(h2))
    pooled = h2.max(axis=2)                           # MaxPool1d(S//2) + squeeze
    logits = pooled @ wl.T + bl
    return jax.nn.softmax(logits, axis=1)


if __name__ == "__main__":
    # S=16 words, V=32-dim word vectors, K=3 kernel width, C=8 filters, F=4 classes, B=2
    B, S, V, K, C, Fo = 2, 16, 32, 3, 8, 4

    key = jax.random.PRNGKey(0)
    kx, k1, k2, k3, k4, k5, k6 = jax.random.split(key, 7)
    x = jax.random.normal(kx, (B, S, V), jnp.float32)
    w1 = 0.1 * jax.random.normal(k1, (C, 1, K, V), jnp.float32)   # Conv2d weight
    b1 = 0.1 * jax.random.normal(k2, (C,), jnp.float32)
    w2 = 0.1 * jax.random.normal(k3, (C, C, K), jnp.float32)      # Conv1d weight
    b2 = 0.1 * jax.random.normal(k4, (C,), jnp.float32)
    wl = 0.1 * jax.random.normal(k5, (Fo, C), jnp.float32)        # Linear weight
    bl = 0.1 * jax.random.normal(k6, (Fo,), jnp.float32)
    gamma = jnp.ones((C,), jnp.float32)    # BatchNorm1d defaults (eval mode)
    beta = jnp.zeros((C,), jnp.float32)
    rmean = jnp.zeros((C,), jnp.float32)
    rvar = jnp.ones((C,), jnp.float32)
    eps = 1e-5
    params = (w1, b1, w2, b2, wl, bl, gamma, beta, rmean, rvar, eps)

    prepped = prepare_params(params)                  # one-time weight prep (hoisted)
    out = jax.block_until_ready(cnn_forward(x, prepped))
    ref = jax.block_until_ready(cnn_reference(x, params))

    assert out.shape == (B, Fo), out.shape
    np.testing.assert_allclose(np.asarray(out), np.asarray(ref), atol=5e-3, rtol=0)
    # approx (EUP) reciprocal in the softmax denom -> rows sum to 1 within ~1e-3
    np.testing.assert_allclose(np.asarray(out).sum(axis=1), np.ones(B), atol=2e-3)
    print("KERNEL_OK")
</pallas_src>

<mosaic_0001>
module attributes {stable_mosaic.version = 11 : i64} {
  func.func @_cnn_kernel(%arg0: memref<32x32xf32, #tpu.memory_space<vmem>>, %arg1: memref<96x8xf32, #tpu.memory_space<vmem>>, %arg2: memref<24x8xf32, #tpu.memory_space<vmem>>, %arg3: memref<8x4xf32, #tpu.memory_space<vmem>>, %arg4: memref<3x8xf32, #tpu.memory_space<vmem>>, %arg5: memref<16x3xf32, #tpu.memory_space<vmem>>, %arg6: memref<2x4xf32, #tpu.memory_space<vmem>>) attributes {dimension_semantics = [], scalar_prefetch = 0 : i64, scratch_operands = 0 : i64, tpu.core_type = #tpu.core_type<tc>} {
    %c0 = arith.constant 0 : index
    %c0_0 = arith.constant 0 : index
    %0 = vector.load %arg5[%c0, %c0_0] : memref<16x3xf32, #tpu.memory_space<vmem>>, vector<16x3xf32>
    %c0_1 = arith.constant 0 : index
    %c0_2 = arith.constant 0 : index
    %1 = vector.load %arg4[%c0_1, %c0_2] : memref<3x8xf32, #tpu.memory_space<vmem>>, vector<3x8xf32>
    %c0_3 = arith.constant 0 : index
    %c0_4 = arith.constant 0 : index
    %2 = vector.load %arg0[%c0_3, %c0_4] : memref<32x32xf32, #tpu.memory_space<vmem>>, vector<32x32xf32>
    %cst = arith.constant 0.000000e+00 : f32
    %3 = vector.broadcast %cst : f32 to vector<16x8xf32>
    %cst_5 = arith.constant 0.000000e+00 : f32
    %4 = vector.broadcast %cst_5 : f32 to vector<16x8xf32>
    %c0_6 = arith.constant 0 : index
    %c0_7 = arith.constant 0 : index
    %5 = vector.load %arg1[%c0_6, %c0_7] : memref<96x8xf32, #tpu.memory_space<vmem>>, vector<32x8xf32>
    %cst_8 = arith.constant dense<0.000000e+00> : vector<32x8xf32>
    %6 = tpu.matmul %2, %5, %cst_8 {dimension_numbers = #tpu.dot_dimension_numbers<[1], [0], [0], [1], [0, 0, 1, 1], [], []>} : vector<32x32xf32>, vector<32x8xf32>, vector<32x8xf32> -> vector<32x8xf32>
    %7 = vector.extract_strided_slice %6 {offsets = [0, 0], sizes = [16, 8], strides = [1, 1]} : vector<32x8xf32> to vector<16x8xf32>
    %8 = vector.extract_strided_slice %6 {offsets = [16, 0], sizes = [16, 8], strides = [1, 1]} : vector<32x8xf32> to vector<16x8xf32>
    %c2_i32 = arith.constant 2 : i32
    %9 = tpu.dynamic_rotate %8 by %c2_i32 dim 0 : vector<16x8xf32>, i32 -> vector<16x8xf32>
    %10 = vector.extract_strided_slice %0 {offsets = [0, 0], sizes = [16, 1], strides = [1, 1]} : vector<16x3xf32> to vector<16x1xf32>
    %11 = vector.broadcast %10 : vector<16x1xf32> to vector<16x8xf32>
    %12 = arith.mulf %9, %11 : vector<16x8xf32>
    %13 = arith.addf %3, %12 : vector<16x8xf32>
    %14 = arith.addf %4, %7 : vector<16x8xf32>
    %c32 = arith.constant 32 : index
    %c0_9 = arith.constant 0 : index
    %15 = vector.load %arg1[%c32, %c0_9] : memref<96x8xf32, #tpu.memory_space<vmem>>, vector<32x8xf32>
    %cst_10 = arith.constant dense<0.000000e+00> : vector<32x8xf32>
    %16 = tpu.matmul %2, %15, %cst_10 {dimension_numbers = #tpu.dot_dimension_numbers<[1], [0], [0], [1], [0, 0, 1, 1], [], []>} : vector<32x32xf32>, vector<32x8xf32>, vector<32x8xf32> -> vector<32x8xf32>
    %17 = vector.extract_strided_slice %16 {offsets = [0, 0], sizes = [16, 8], strides = [1, 1]} : vector<32x8xf32> to vector<16x8xf32>
    %18 = vector.extract_strided_slice %16 {offsets = [16, 0], sizes = [16, 8], strides = [1, 1]} : vector<32x8xf32> to vector<16x8xf32>
    %19 = arith.addf %13, %17 : vector<16x8xf32>
    %20 = arith.addf %14, %18 : vector<16x8xf32>
    %c64 = arith.constant 64 : index
    %c0_11 = arith.constant 0 : index
    %21 = vector.load %arg1[%c64, %c0_11] : memref<96x8xf32, #tpu.memory_space<vmem>>, vector<32x8xf32>
    %cst_12 = arith.constant dense<0.000000e+00> : vector<32x8xf32>
    %22 = tpu.matmul %2, %21, %cst_12 {dimension_numbers = #tpu.dot_dimension_numbers<[1], [0], [0], [1], [0, 0, 1, 1], [], []>} : vector<32x32xf32>, vector<32x8xf32>, vector<32x8xf32> -> vector<32x8xf32>
    %23 = vector.extract_strided_slice %22 {offsets = [0, 0], sizes = [16, 8], strides = [1, 1]} : vector<32x8xf32> to vector<16x8xf32>
    %24 = vector.extract_strided_slice %22 {offsets = [16, 0], sizes = [16, 8], strides = [1, 1]} : vector<32x8xf32> to vector<16x8xf32>
    %25 = arith.addf %19, %24 : vector<16x8xf32>
    %c14_i32 = arith.constant 14 : i32
    %26 = tpu.dynamic_rotate %23 by %c14_i32 dim 0 : vector<16x8xf32>, i32 -> vector<16x8xf32>
    %27 = vector.extract_strided_slice %0 {offsets = [0, 2], sizes = [16, 1], strides = [1, 1]} : vector<16x3xf32> to vector<16x1xf32>
    %28 = vector.broadcast %27 : vector<16x1xf32> to vector<16x8xf32>
    %29 = arith.mulf %26, %28 : vector<16x8xf32>
    %30 = arith.addf %20, %29 : vector<16x8xf32>
    %31 = vector.extract_strided_slice %1 {offsets = [0, 0], sizes = [1, 8], strides = [1, 1]} : vector<3x8xf32> to vector<1x8xf32>
    %32 = arith.maximumf %25, %30 : vector<16x8xf32>
    %33 = vector.broadcast %31 : vector<1x8xf32> to vector<16x8xf32>
    %34 = arith.addf %32, %33 : vector<16x8xf32>
    %cst_13 = arith.constant 0.000000e+00 : f32
    %35 = vector.broadcast %cst_13 : f32 to vector<16x8xf32>
    %36 = arith.maximumf %34, %35 : vector<16x8xf32>
    %cst_14 = arith.constant 0.000000e+00 : f32
    %37 = vector.broadcast %cst_14 : f32 to vector<16x8xf32>
    %c0_15 = arith.constant 0 : index
    %c0_16 = arith.constant 0 : index
    %38 = vector.load %arg2[%c0_15, %c0_16] : memref<24x8xf32, #tpu.memory_space<vmem>>, vector<8x8xf32>
    %cst_17 = arith.constant dense<0.000000e+00> : vector<16x8xf32>
    %39 = tpu.matmul %36, %38, %cst_17 {dimension_numbers = #tpu.dot_dimension_numbers<[1], [0], [0], [1], [0, 0, 1, 1], [], []>} : vector<16x8xf32>, vector<8x8xf32>, vector<16x8xf32> -> vector<16x8xf32>
    %c2_i32_18 = arith.constant 2 : i32
    %40 = tpu.dynamic_rotate %39 by %c2_i32_18 dim 0 : vector<16x8xf32>, i32 -> vector<16x8xf32>
    %41 = vector.extract_strided_slice %0 {offsets = [0, 0], sizes = [16, 1], strides = [1, 1]} : vector<16x3xf32> to vector<16x1xf32>
    %42 = vector.broadcast %41 : vector<16x1xf32> to vector<16x8xf32>
    %43 = arith.mulf %40, %42 : vector<16x8xf32>
    %44 = arith.addf %37, %43 : vector<16x8xf32>
    %c8 = arith.constant 8 : index
    %c0_19 = arith.constant 0 : index
    %45 = vector.load %arg2[%c8, %c0_19] : memref<24x8xf32, #tpu.memory_space<vmem>>, vector<8x8xf32>
    %cst_20 = arith.constant dense<0.000000e+00> : vector<16x8xf32>
    %46 = tpu.matmul %36, %45, %cst_20 {dimension_numbers = #tpu.dot_dimension_numbers<[1], [0], [0], [1], [0, 0, 1, 1], [], []>} : vector<16x8xf32>, vector<8x8xf32>, vector<16x8xf32> -> vector<16x8xf32>
    %47 = arith.addf %44, %46 : vector<16x8xf32>
    %c16 = arith.constant 16 : index
    %c0_21 = arith.constant 0 : index
    %48 = vector.load %arg2[%c16, %c0_21] : memref<24x8xf32, #tpu.memory_space<vmem>>, vector<8x8xf32>
    %cst_22 = arith.constant dense<0.000000e+00> : vector<16x8xf32>
    %49 = tpu.matmul %36, %48, %cst_22 {dimension_numbers = #tpu.dot_dimension_numbers<[1], [0], [0], [1], [0, 0, 1, 1], [], []>} : vector<16x8xf32>, vector<8x8xf32>, vector<16x8xf32> -> vector<16x8xf32>
    %c14_i32_23 = arith.constant 14 : i32
    %50 = tpu.dynamic_rotate %49 by %c14_i32_23 dim 0 : vector<16x8xf32>, i32 -> vector<16x8xf32>
    %51 = vector.extract_strided_slice %0 {offsets = [0, 2], sizes = [16, 1], strides = [1, 1]} : vector<16x3xf32> to vector<16x1xf32>
    %52 = vector.broadcast %51 : vector<16x1xf32> to vector<16x8xf32>
    %53 = arith.mulf %50, %52 : vector<16x8xf32>
    %54 = arith.addf %47, %53 : vector<16x8xf32>
    %55 = vector.extract_strided_slice %1 {offsets = [1, 0], sizes = [1, 8], strides = [1, 1]} : vector<3x8xf32> to vector<1x8xf32>
    %56 = vector.broadcast %55 : vector<1x8xf32> to vector<16x8xf32>
    %57 = arith.addf %54, %56 : vector<16x8xf32>
    %cst_24 = arith.constant 0.000000e+00 : f32
    %58 = vector.broadcast %cst_24 : f32 to vector<16x8xf32>
    %59 = arith.maximumf %57, %58 : vector<16x8xf32>
    %60 = vector.extract_strided_slice %59 {offsets = [0, 0], sizes = [8, 8], strides = [1, 1]} : vector<16x8xf32> to vector<8x8xf32>
    %61 = vector.extract_strided_slice %59 {offsets = [8, 0], sizes = [8, 8], strides = [1, 1]} : vector<16x8xf32> to vector<8x8xf32>
    %62 = arith.maximumf %60, %61 : vector<8x8xf32>
    %63 = vector.extract_strided_slice %62 {offsets = [0, 0], sizes = [4, 8], strides = [1, 1]} : vector<8x8xf32> to vector<4x8xf32>
    %64 = vector.extract_strided_slice %62 {offsets = [4, 0], sizes = [4, 8], strides = [1, 1]} : vector<8x8xf32> to vector<4x8xf32>
    %65 = arith.maximumf %63, %64 : vector<4x8xf32>
    %66 = vector.extract_strided_slice %65 {offsets = [0, 0], sizes = [2, 8], strides = [1, 1]} : vector<4x8xf32> to vector<2x8xf32>
    %67 = vector.extract_strided_slice %65 {offsets = [2, 0], sizes = [2, 8], strides = [1, 1]} : vector<4x8xf32> to vector<2x8xf32>
    %68 = arith.maximumf %66, %67 : vector<2x8xf32>
    %69 = vector.extract_strided_slice %1 {offsets = [2, 0], sizes = [1, 4], strides = [1, 1]} : vector<3x8xf32> to vector<1x4xf32>
    %c0_25 = arith.constant 0 : index
    %c0_26 = arith.constant 0 : index
    %70 = vector.load %arg3[%c0_25, %c0_26] : memref<8x4xf32, #tpu.memory_space<vmem>>, vector<8x4xf32>
    %cst_27 = arith.constant dense<0.000000e+00> : vector<2x4xf32>
    %71 = tpu.matmul %68, %70, %cst_27 {dimension_numbers = #tpu.dot_dimension_numbers<[1], [0], [0], [1], [0, 0, 1, 1], [], []>} : vector<2x8xf32>, vector<8x4xf32>, vector<2x4xf32> -> vector<2x4xf32>
    %72 = vector.broadcast %69 : vector<1x4xf32> to vector<2x4xf32>
    %73 = arith.addf %71, %72 : vector<2x4xf32>
    %cst_28 = arith.constant dense<0xFF800000> : vector<2xf32>
    %74 = vector.multi_reduction <maximumf>, %73, %cst_28 [1] : vector<2x4xf32> to vector<2xf32>
    %75 = vector.shape_cast %74 : vector<2xf32> to vector<2x1xf32>
    %76 = vector.broadcast %75 : vector<2x1xf32> to vector<2x4xf32>
    %77 = arith.subf %73, %76 : vector<2x4xf32>
    %78 = math.exp %77 : vector<2x4xf32>
    %cst_29 = arith.constant dense<0.000000e+00> : vector<2xf32>
    %79 = vector.multi_reduction <add>, %78, %cst_29 [1] : vector<2x4xf32> to vector<2xf32>
    %80 = vector.shape_cast %79 : vector<2xf32> to vector<2x1xf32>
    %81 = tpu.reciprocal %80 {approx = true} : vector<2x1xf32> -> vector<2x1xf32>
    %82 = vector.broadcast %81 : vector<2x1xf32> to vector<2x4xf32>
    %83 = arith.mulf %78, %82 : vector<2x4xf32>
    %c0_30 = arith.constant 0 : index
    %c0_31 = arith.constant 0 : index
    %84 = vector.load %arg6[%c0_30, %c0_31] : memref<2x4xf32, #tpu.memory_space<vmem>>, vector<2x4xf32>
    tpu.vector_store %arg6[%c0_30, %c0_31], %83 {strides = array<i32>} : memref<2x4xf32, #tpu.memory_space<vmem>>, vector<2x4xf32>,
    return
  }
}

</mosaic_0001>

<llo_original>
// kernel: cnn_forward.1
$region0: #{cnn_forward.1}
  #allocation0 [shape = 'u32[]', space=smem, size = 0x4, offset = 0x4, fixed_abs, tag = 'smem constant byte address 0x4 - core index']
  #allocation1 [shape = 'u32[144,128]{1,0:T(1,128)}', space=vmem, size = 0x12000, scoped, tag = 'internal scratch']
  %s0 = inlined_call_operand.vmem [shape: f32[32,32], index: 0, kind: input, shape index: {}]
  %s1 = inlined_call_operand.vmem [shape: f32[96,8], index: 1, kind: input, shape index: {}]
  %s2 = inlined_call_operand.vmem [shape: f32[24,8], index: 2, kind: input, shape index: {}]
  %s3 = inlined_call_operand.vmem [shape: f32[8,4], index: 3, kind: input, shape index: {}]
  %s4 = inlined_call_operand.vmem [shape: f32[3,8], index: 4, kind: input, shape index: {}]
  %s5 = inlined_call_operand.vmem [shape: f32[16,3], index: 5, kind: input, shape index: {}]
  %s6 = inlined_call_operand.hbm [shape: f32[2,4], index: 6, kind: output, shape index: {}]
  %s7 = sld [smem:[#allocation0]]
  $region34: #{cnn_forward.1} parent=0
    _
  %s9 = ssub.s32 1, %s7
  %s10 = scalar_select 0, %s9, %s7
  $region1: #{cnn_forward.1} parent=0
    #allocation2 [shape = 'u8[1024]{0}', space=vmem, size = 0x400, scoped, tag = 'output window, operand 0, single buffered']
    #allocation3 [shape = 's32[1]{0}', space=sflag, size = 0x4, scoped, tag = 'scoped memory for cnn_forward.1']
    %11 = vsyncpa [#allocation3], 0
    // Predicated region
    $region2: #{cnn_forward.1} parent=1 // pred_check
      _
    $region3: #{cnn_forward.1} parent=1 // pred_check_branch
      %13 = sbr.rel (0) target = $region5
    $region4: #{cnn_forward.1} parent=1 // pred_region
      _
    $region5: #{cnn_forward.1} parent=1 // pred_fallthru
      _
    // Predicated region
    $region6: #{cnn_forward.1} parent=1 // pred_check
      _
    $region7: #{cnn_forward.1} parent=1 // pred_check_branch
      %15 = sbr.rel (0) target = $region9
    $region8: #{cnn_forward.1} parent=1 // pred_region
      _
    $region9: #{cnn_forward.1} parent=1 // pred_fallthru
      _
    // Predicated region
    $region10: #{cnn_forward.1} parent=1 // pred_check
      _
    $region11: #{cnn_forward.1} parent=1 // pred_check_branch
      %17 = sbr.rel (0) target = $region13
    $region12: #{cnn_forward.1} parent=1 // pred_region
      _
    $region13: #{cnn_forward.1} parent=1 // pred_fallthru
      _
    // Predicated region
    $region14: #{cnn_forward.1} parent=1 // pred_check
      _
    $region15: #{cnn_forward.1} parent=1 // pred_check_branch
      %19 = sbr.rel (0) target = $region17
    $region16: #{cnn_forward.1} parent=1 // pred_region
      _
    $region17: #{cnn_forward.1} parent=1 // pred_fallthru
      _
    // Predicated region
    $region18: #{cnn_forward.1} parent=1 // pred_check
      _
    $region19: #{cnn_forward.1} parent=1 // pred_check_branch
      %21 = sbr.rel (0) target = $region21
    $region20: #{cnn_forward.1} parent=1 // pred_region
      _
    $region21: #{cnn_forward.1} parent=1 // pred_fallthru
      _
    // Predicated region
    $region22: #{cnn_forward.1} parent=1 // pred_check
      _
    $region23: #{cnn_forward.1} parent=1 // pred_check_branch
      %23 = sbr.rel (0) target = $region25
    $region24: #{cnn_forward.1} parent=1 // pred_region
      _
    $region25: #{cnn_forward.1} parent=1 // pred_fallthru
      _
    %v24 = vld [vmem:[%s5] sm:$0xff]
    %v25 = vld [vmem:[%s5 + $0x8] sm:$0xff]
    %v26 = vld [vmem:[%s4] sm:$0x7]
    %v27 = vld [vmem:[%s0] sm:$0xff]
    %v28 = vld [vmem:[%s0 + $0x8] sm:$0xff]
    %v29 = vld [vmem:[%s0 + $0x10] sm:$0xff]
    %v30 = vld [vmem:[%s0 + $0x18] sm:$0xff]
    %v31 = vld [vmem:[%s1] sm:$0xff]
    %v32 = vld [vmem:[%s1 + $0x8] sm:$0xff]
    %v33 = vld [vmem:[%s1 + $0x10] sm:$0xff]
    %v34 = vld [vmem:[%s1 + $0x18] sm:$0xff]
    %vm35 = vcmask 261120
    %v37 = vsel %vm35, %v27, 0
    %v40 = vsel %vm35, %v28, 0
    %v43 = vsel %vm35, %v29, 0
    %v46 = vsel %vm35, %v30, 0
    %48 = vmatprep.subr.mxu0 0.0
    %49 = vmatpush1.msra.mxu0 %v31
    %50 = vmatprep.subr.mxu0 0.0
    %51 = vmatpush1.msra.mxu0 %v32
    %52 = vmatprep.subr.mxu0 0.0
    %53 = vmatpush1.msra.mxu0 %v33
    %54 = vmatprep.subr.mxu0 0.0
    %55 = vmatpush1.msra.mxu0 %v34
    %56 = vmatprep.subr.mxu0 0.0
    %57 = vmatpush1.msra.mxu0 0.0
    %58 = vmatprep.subr.mxu0 0.0
    %59 = vmatpush1.msra.mxu0 0.0
    %60 = vmatprep.subr.mxu0 0.0
    %61 = vmatpush1.msra.mxu0 0.0
    %62 = vmatprep.subr.mxu0 0.0
    %63 = vmatpush1.msra.mxu0 0.0
    %64 = vmatprep.subr.mxu0 0.0
    %65 = vmatpush1.msra.mxu0 0.0
    %66 = vmatprep.subr.mxu0 0.0
    %67 = vmatpush1.msra.mxu0 0.0
    %68 = vmatprep.subr.mxu0 0.0
    %69 = vmatpush1.msra.mxu0 0.0
    %70 = vmatprep.subr.mxu0 0.0
    %71 = vmatpush1.msra.mxu0 0.0
    %72 = vmatprep.subr.mxu0 0.0
    %73 = vmatpush1.msra.mxu0 0.0
    %74 = vmatprep.subr.mxu0 0.0
    %75 = vmatpush1.msra.mxu0 0.0
    %76 = vmatprep.subr.mxu0 0.0
    %77 = vmatpush1.msra.mxu0 0.0
    %78 = vmatprep.subr.mxu0 0.0
    %79 = vmatpush1.msra.mxu0 0.0
    %80 = vmatprep.subr.mxu0 0.0
    %81 = vmatpush1.msra.mxu0 0.0
    %82 = vmatprep.subr.mxu0 0.0
    %83 = vmatpush1.msra.mxu0 0.0
    %84 = vmatprep.subr.mxu0 0.0
    %85 = vmatpush1.msra.mxu0 0.0
    %86 = vmatprep.subr.mxu0 0.0
    %87 = vmatpush1.msra.mxu0 0.0
    %88 = vmatprep.subr.mxu0 0.0
    %89 = vmatpush1.msra.mxu0 0.0
    %90 = vmatprep.subr.mxu0 0.0
    %91 = vmatpush1.msra.mxu0 0.0
    %92 = vmatprep.subr.mxu0 0.0
    %93 = vmatpush1.msra.mxu0 0.0
    %94 = vmatprep.subr.mxu0 0.0
    %95 = vmatpush1.msra.mxu0 0.0
    %96 = vmatprep.subr.mxu0 0.0
    %97 = vmatpush1.msra.mxu0 0.0
    %98 = vmatprep.subr.mxu0 0.0
    %99 = vmatpush1.msra.mxu0 0.0
    %100 = vmatprep.subr.mxu0 0.0
    %101 = vmatpush1.msra.mxu0 0.0
    %102 = vmatprep.subr.mxu0 0.0
    %103 = vmatpush1.msra.mxu0 0.0
    %104 = vmatprep.subr.mxu0 0.0
    %105 = vmatpush1.msra.mxu0 0.0
    %106 = vmatprep.subr.mxu0 0.0
    %107 = vmatpush1.msra.mxu0 0.0
    %108 = vmatprep.subr.mxu0 0.0
    %109 = vmatpush1.msra.mxu0 0.0
    %110 = vmatprep.subr.mxu0 0.0
    %111 = vmatpush1.msra.mxu0 0.0
    %112 = vmatprep.mubr.f32.mxu0 0.0
    %113 = vmatmul.mubr.f32.gmra.mrb[0].mxu0 %v37
    %v114 = vpop.f32.mrb[0].mxu0
    %v115 = vadd.f32 0.0, %v114
    %v116 = vpop.f32.mrb[0].mxu0
    %117 = vmatprep.mubr.f32.mxu0 0.0
    %118 = vmatmul.mubr.f32.gmra.mrb[0].mxu0 %v40
    %v119 = vpop.f32.mrb[0].mxu0
    %v120 = vadd.f32 0.0, %v119
    %v121 = vpop.f32.mrb[0].mxu0
    %122 = vmatprep.mubr.f32.mxu0 0.0
    %123 = vmatmul.mubr.f32.gmra.mrb[0].mxu0 %v43
    %v124 = vpop.f32.mrb[0].mxu0
    %v125 = vadd.f32 0.0, %v124
    %v126 = vpop.f32.mrb[0].mxu0
    %127 = vmatprep.mubr.f32.mxu0 0.0
    %128 = vmatmul.mubr.f32.gmra.mrb[0].mxu0 %v46
    %v129 = vpop.f32.mrb[0].mxu0
    %v130 = vadd.f32 0.0, %v129
    %v131 = vpop.f32.mrb[0].mxu0
    %132 = vdwg.mxu0
    %v133 = vrot.slane %v125, 6
    %v134 = vrot.slane %v130, 6
    %v135 = vlaneseq
    %v136 = vshrl.u32 %v135, 7
    %vm137 = vcmp.lt.s32.totalorder %v136, 2
    %v138 = vsel %vm137, %v133, %v134
    %v139 = vsel %vm137, %v134, %v133
    %141 = vset.pattern.permute.xlu0 0
    %142 = vperm.xlu0 %141, %v24
    %v143 = vpop.permute.xlu0 %142
    %146 = vset.pattern.permute.xlu0 0
    %147 = vperm.xlu0 %146, %v25
    %v148 = vpop.permute.xlu0 %147
    %v150 = vmul.f32 %v139, %v143
    %v151 = vmul.f32 %v138, %v148
    %v152 = vadd.f32 %v150, 0.0
    %v153 = vadd.f32 %v151, 0.0
    %v154 = vadd.f32 %v115, 0.0
    %v155 = vadd.f32 %v120, 0.0
    %v156 = vld [vmem:[%s1 + $0x20] sm:$0xff]
    %v157 = vld [vmem:[%s1 + $0x28] sm:$0xff]
    %v158 = vld [vmem:[%s1 + $0x30] sm:$0xff]
    %v159 = vld [vmem:[%s1 + $0x38] sm:$0xff]
    %160 = vmatprep.subr.mxu0 0.0
    %161 = vmatpush1.msra.mxu0 %v156
    %162 = vmatprep.subr.mxu0 0.0
    %163 = vmatpush1.msra.mxu0 %v157
    %164 = vmatprep.subr.mxu0 0.0
    %165 = vmatpush1.msra.mxu0 %v158
    %166 = vmatprep.subr.mxu0 0.0
    %167 = vmatpush1.msra.mxu0 %v159
    %168 = vmatprep.subr.mxu0 0.0
    %169 = vmatpush1.msra.mxu0 0.0
    %170 = vmatprep.subr.mxu0 0.0
    %171 = vmatpush1.msra.mxu0 0.0
    %172 = vmatprep.subr.mxu0 0.0
    %173 = vmatpush1.msra.mxu0 0.0
    %174 = vmatprep.subr.mxu0 0.0
    %175 = vmatpush1.msra.mxu0 0.0
    %176 = vmatprep.subr.mxu0 0.0
    %177 = vmatpush1.msra.mxu0 0.0
    %178 = vmatprep.subr.mxu0 0.0
    %179 = vmatpush1.msra.mxu0 0.0
    %180 = vmatprep.subr.mxu0 0.0
    %181 = vmatpush1.msra.mxu0 0.0
    %182 = vmatprep.subr.mxu0 0.0
    %183 = vmatpush1.msra.mxu0 0.0
    %184 = vmatprep.subr.mxu0 0.0
    %185 = vmatpush1.msra.mxu0 0.0
    %186 = vmatprep.subr.mxu0 0.0
    %187 = vmatpush1.msra.mxu0 0.0
    %188 = vmatprep.subr.mxu0 0.0
    %189 = vmatpush1.msra.mxu0 0.0
    %190 = vmatprep.subr.mxu0 0.0
    %191 = vmatpush1.msra.mxu0 0.0
    %192 = vmatprep.subr.mxu0 0.0
    %193 = vmatpush1.msra.mxu0 0.0
    %194 = vmatprep.subr.mxu0 0.0
    %195 = vmatpush1.msra.mxu0 0.0
    %196 = vmatprep.subr.mxu0 0.0
    %197 = vmatpush1.msra.mxu0 0.0
    %198 = vmatprep.subr.mxu0 0.0
    %199 = vmatpush1.msra.mxu0 0.0
    %200 = vmatprep.subr.mxu0 0.0
    %201 = vmatpush1.msra.mxu0 0.0
    %202 = vmatprep.subr.mxu0 0.0
    %203 = vmatpush1.msra.mxu0 0.0
    %204 = vmatprep.subr.mxu0 0.0
    %205 = vmatpush1.msra.mxu0 0.0
    %206 = vmatprep.subr.mxu0 0.0
    %207 = vmatpush1.msra.mxu0 0.0
    %208 = vmatprep.subr.mxu0 0.0
    %209 = vmatpush1.msra.mxu0 0.0
    %210 = vmatprep.subr.mxu0 0.0
    %211 = vmatpush1.msra.mxu0 0.0
    %212 = vmatprep.subr.mxu0 0.0
    %213 = vmatpush1.msra.mxu0 0.0
    %214 = vmatprep.subr.mxu0 0.0
    %215 = vmatpush1.msra.mxu0 0.0
    %216 = vmatprep.subr.mxu0 0.0
    %217 = vmatpush1.msra.mxu0 0.0
    %218 = vmatprep.subr.mxu0 0.0
    %219 = vmatpush1.msra.mxu0 0.0
    %220 = vmatprep.subr.mxu0 0.0
    %221 = vmatpush1.msra.mxu0 0.0
    %222 = vmatprep.subr.mxu0 0.0
    %223 = vmatpush1.msra.mxu0 0.0
    %224 = vmatprep.mubr.f32.mxu0 0.0
    %225 = vmatmul.mubr.f32.gmra.mrb[0].mxu0 %v37
    %v226 = vpop.f32.mrb[0].mxu0
    %v227 = vadd.f32 0.0, %v226
    %v228 = vpop.f32.mrb[0].mxu0
    %229 = vmatprep.mubr.f32.mxu0 0.0
    %230 = vmatmul.mubr.f32.gmra.mrb[0].mxu0 %v40
    %v231 = vpop.f32.mrb[0].mxu0
    %v232 = vadd.f32 0.0, %v231
    %v233 = vpop.f32.mrb[0].mxu0
    %234 = vmatprep.mubr.f32.mxu0 0.0
    %235 = vmatmul.mubr.f32.gmra.mrb[0].mxu0 %v43
    %v236 = vpop.f32.mrb[0].mxu0
    %v237 = vadd.f32 0.0, %v236
    %v238 = vpop.f32.mrb[0].mxu0
    %239 = vmatprep.mubr.f32.mxu0 0.0
    %240 = vmatmul.mubr.f32.gmra.mrb[0].mxu0 %v46
    %v241 = vpop.f32.mrb[0].mxu0
    %v242 = vadd.f32 0.0, %v241
    %v243 = vpop.f32.mrb[0].mxu0
    %244 = vdwg.mxu0
    %v245 = vadd.f32 %v152, %v227
    %v246 = vadd.f32 %v153, %v232
    %v247 = vadd.f32 %v154, %v237
    %v248 = vadd.f32 %v155, %v242
    %v249 = vld [vmem:[%s1 + $0x40] sm:$0xff]
    %v250 = vld [vmem:[%s1 + $0x48] sm:$0xff]
    %v251 = vld [vmem:[%s1 + $0x50] sm:$0xff]
    %v252 = vld [vmem:[%s1 + $0x58] sm:$0xff]
    %253 = vmatprep.subr.mxu0 0.0
    %254 = vmatpush1.msra.mxu0 %v249
    %255 = vmatprep.subr.mxu0 0.0
    %256 = vmatpush1.msra.mxu0 %v250
    %257 = vmatprep.subr.mxu0 0.0
    %258 = vmatpush1.msra.mxu0 %v251
    %259 = vmatprep.subr.mxu0 0.0
    %260 = vmatpush1.msra.mxu0 %v252
    %261 = vmatprep.subr.mxu0 0.0
    %262 = vmatpush1.msra.mxu0 0.0
    %263 = vmatprep.subr.mxu0 0.0
    %264 = vmatpush1.msra.mxu0 0.0
    %265 = vmatprep.subr.mxu0 0.0
    %266 = vmatpush1.msra.mxu0 0.0
    %267 = vmatprep.subr.mxu0 0.0
    %268 = vmatpush1.msra.mxu0 0.0
    %269 = vmatprep.subr.mxu0 0.0
    %270 = vmatpush1.msra.mxu0 0.0
    %271 = vmatprep.subr.mxu0 0.0
    %272 = vmatpush1.msra.mxu0 0.0
    %273 = vmatprep.subr.mxu0 0.0
    %274 = vmatpush1.msra.mxu0 0.0
    %275 = vmatprep.subr.mxu0 0.0
    %276 = vmatpush1.msra.mxu0 0.0
    %277 = vmatprep.subr.mxu0 0.0
    %278 = vmatpush1.msra.mxu0 0.0
    %279 = vmatprep.subr.mxu0 0.0
    %280 = vmatpush1.msra.mxu0 0.0
    %281 = vmatprep.subr.mxu0 0.0
    %282 = vmatpush1.msra.mxu0 0.0
    %283 = vmatprep.subr.mxu0 0.0
    %284 = vmatpush1.msra.mxu0 0.0
    %285 = vmatprep.subr.mxu0 0.0
    %286 = vmatpush1.msra.mxu0 0.0
    %287 = vmatprep.subr.mxu0 0.0
    %288 = vmatpush1.msra.mxu0 0.0
    %289 = vmatprep.subr.mxu0 0.0
    %290 = vmatpush1.msra.mxu0 0.0
    %291 = vmatprep.subr.mxu0 0.0
    %292 = vmatpush1.msra.mxu0 0.0
    %293 = vmatprep.subr.mxu0 0.0
    %294 = vmatpush1.msra.mxu0 0.0
    %295 = vmatprep.subr.mxu0 0.0
    %296 = vmatpush1.msra.mxu0 0.0
    %297 = vmatprep.subr.mxu0 0.0
    %298 = vmatpush1.msra.mxu0 0.0
    %299 = vmatprep.subr.mxu0 0.0
    %300 = vmatpush1.msra.mxu0 0.0
    %301 = vmatprep.subr.mxu0 0.0
    %302 = vmatpush1.msra.mxu0 0.0
    %303 = vmatprep.subr.mxu0 0.0
    %304 = vmatpush1.msra.mxu0 0.0
    %305 = vmatprep.subr.mxu0 0.0
    %306 = vmatpush1.msra.mxu0 0.0
    %307 = vmatprep.subr.mxu0 0.0
    %308 = vmatpush1.msra.mxu0 0.0
    %309 = vmatprep.subr.mxu0 0.0
    %310 = vmatpush1.msra.mxu0 0.0
    %311 = vmatprep.subr.mxu0 0.0
    %312 = vmatpush1.msra.mxu0 0.0
    %313 = vmatprep.subr.mxu0 0.0
    %314 = vmatpush1.msra.mxu0 0.0
    %315 = vmatprep.subr.mxu0 0.0
    %316 = vmatpush1.msra.mxu0 0.0
    %317 = vmatprep.mubr.f32.mxu0 0.0
    %318 = vmatmul.mubr.f32.gmra.mrb[0].mxu0 %v37
    %v319 = vpop.f32.mrb[0].mxu0
    %v320 = vadd.f32 0.0, %v319
    %v321 = vpop.f32.mrb[0].mxu0
    %322 = vmatprep.mubr.f32.mxu0 0.0
    %323 = vmatmul.mubr.f32.gmra.mrb[0].mxu0 %v40
    %v324 = vpop.f32.mrb[0].mxu0
    %v325 = vadd.f32 0.0, %v324
    %v326 = vpop.f32.mrb[0].mxu0
    %327 = vmatprep.mubr.f32.mxu0 0.0
    %328 = vmatmul.mubr.f32.gmra.mrb[0].mxu0 %v43
    %v329 = vpop.f32.mrb[0].mxu0
    %v330 = vadd.f32 0.0, %v329
    %v331 = vpop.f32.mrb[0].mxu0
    %332 = vmatprep.mubr.f32.mxu0 0.0
    %333 = vmatmul.mubr.f32.gmra.mrb[0].mxu0 %v46
    %v334 = vpop.f32.mrb[0].mxu0
    %v335 = vadd.f32 0.0, %v334
    %v336 = vpop.f32.mrb[0].mxu0
    %337 = vdwg.mxu0
    %v338 = vadd.f32 %v245, %v330
    %v339 = vadd.f32 %v246, %v335
    %v340 = vrot.slane %v320, 2
    %v341 = vrot.slane %v325, 2
    %vm342 = vcmp.lt.s32.totalorder %v136, 6
    %v343 = vsel %vm342, %v340, %v341
    %v344 = vsel %vm342, %v341, %v340
    %345 = vset.pattern.permute.xlu0 2
    %346 = vperm.xlu0 %345, %v24
    %v347 = vpop.permute.xlu0 %346
    %349 = vset.pattern.permute.xlu0 2
    %350 = vperm.xlu0 %349, %v25
    %v351 = vpop.permute.xlu0 %350
    %v353 = vmul.f32 %v343, %v347
    %v354 = vmul.f32 %v344, %v351
    %v355 = vadd.f32 %v247, %v353
    %v356 = vadd.f32 %v248, %v354
    %v357 = vmax.f32 %v338, %v355
    %v358 = vmax.f32 %v339, %v356
    %v359 = vlaneseq
    %v360 = vshrl.u32 %v359, 7
    %v361 = vsub.s32 0, %v360
    %v362 = vrot.slane %v26, %v361
    %v363 = vadd.f32 %v357, %v362
    %v364 = vadd.f32 %v358, %v362
    %v365 = vmax.f32 %v363, 0.0
    %v366 = vmax.f32 %v364, 0.0
    %v367 = vld [vmem:[%s2] sm:$0xff]
    %vm368 = vcmask 64512
    %v370 = vsel %vm368, %v365, 0
    %v373 = vsel %vm368, %v366, 0
    %375 = vmatprep.subr.mxu0 0.0
    %376 = vmatpush1.msra.mxu0 %v367
    %377 = vmatprep.subr.mxu0 0.0
    %378 = vmatpush1.msra.mxu0 0.0
    %379 = vmatprep.subr.mxu0 0.0
    %380 = vmatpush1.msra.mxu0 0.0
    %381 = vmatprep.subr.mxu0 0.0
    %382 = vmatpush1.msra.mxu0 0.0
    %383 = vmatprep.subr.mxu0 0.0
    %384 = vmatpush1.msra.mxu0 0.0
    %385 = vmatprep.subr.mxu0 0.0
    %386 = vmatpush1.msra.mxu0 0.0
    %387 = vmatprep.subr.mxu0 0.0
    %388 = vmatpush1.msra.mxu0 0.0
    %389 = vmatprep.subr.mxu0 0.0
    %390 = vmatpush1.msra.mxu0 0.0
    %391 = vmatprep.subr.mxu0 0.0
    %392 = vmatpush1.msra.mxu0 0.0
    %393 = vmatprep.subr.mxu0 0.0
    %394 = vmatpush1.msra.mxu0 0.0
    %395 = vmatprep.subr.mxu0 0.0
    %396 = vmatpush1.msra.mxu0 0.0
    %397 = vmatprep.subr.mxu0 0.0
    %398 = vmatpush1.msra.mxu0 0.0
    %399 = vmatprep.subr.mxu0 0.0
    %400 = vmatpush1.msra.mxu0 0.0
    %401 = vmatprep.subr.mxu0 0.0
    %402 = vmatpush1.msra.mxu0 0.0
    %403 = vmatprep.subr.mxu0 0.0
    %404 = vmatpush1.msra.mxu0 0.0
    %405 = vmatprep.subr.mxu0 0.0
    %406 = vmatpush1.msra.mxu0 0.0
    %407 = vmatprep.subr.mxu0 0.0
    %408 = vmatpush1.msra.mxu0 0.0
    %409 = vmatprep.subr.mxu0 0.0
    %410 = vmatpush1.msra.mxu0 0.0
    %411 = vmatprep.subr.mxu0 0.0
    %412 = vmatpush1.msra.mxu0 0.0
    %413 = vmatprep.subr.mxu0 0.0
    %414 = vmatpush1.msra.mxu0 0.0
    %415 = vmatprep.subr.mxu0 0.0
    %416 = vmatpush1.msra.mxu0 0.0
    %417 = vmatprep.subr.mxu0 0.0
    %418 = vmatpush1.msra.mxu0 0.0
    %419 = vmatprep.subr.mxu0 0.0
    %420 = vmatpush1.msra.mxu0 0.0
    %421 = vmatprep.subr.mxu0 0.0
    %422 = vmatpush1.msra.mxu0 0.0
    %423 = vmatprep.subr.mxu0 0.0
    %424 = vmatpush1.msra.mxu0 0.0
    %425 = vmatprep.subr.mxu0 0.0
    %426 = vmatpush1.msra.mxu0 0.0
    %427 = vmatprep.subr.mxu0 0.0
    %428 = vmatpush1.msra.mxu0 0.0
    %429 = vmatprep.subr.mxu0 0.0
    %430 = vmatpush1.msra.mxu0 0.0
    %431 = vmatprep.subr.mxu0 0.0
    %432 = vmatpush1.msra.mxu0 0.0
    %433 = vmatprep.subr.mxu0 0.0
    %434 = vmatpush1.msra.mxu0 0.0
    %435 = vmatprep.subr.mxu0 0.0
    %436 = vmatpush1.msra.mxu0 0.0
    %437 = vmatprep.subr.mxu0 0.0
    %438 = vmatpush1.msra.mxu0 0.0
    %439 = vmatprep.mubr.f32.mxu0 0.0
    %440 = vmatmul.mubr.f32.gmra.mrb[0].mxu0 %v370
    %v441 = vpop.f32.mrb[0].mxu0
    %v442 = vadd.f32 0.0, %v441
    %v443 = vpop.f32.mrb[0].mxu0
    %444 = vmatprep.mubr.f32.mxu0 0.0
    %445 = vmatmul.mubr.f32.gmra.mrb[0].mxu0 %v373
    %v446 = vpop.f32.mrb[0].mxu0
    %v447 = vadd.f32 0.0, %v446
    %v448 = vpop.f32.mrb[0].mxu0
    %449 = vdwg.mxu0
    %v450 = vrot.slane %v442, 6
    %v451 = vrot.slane %v447, 6
    %v452 = vsel %vm137, %v450, %v451
    %v453 = vsel %vm137, %v451, %v450
    %v454 = vmul.f32 %v453, %v143
    %v455 = vmul.f32 %v452, %v148
    %v456 = vadd.f32 %v454, 0.0
    %v457 = vadd.f32 %v455, 0.0
    %v458 = vld [vmem:[%s2 + $0x8] sm:$0xff]
    %459 = vmatprep.subr.mxu0 0.0
    %460 = vmatpush1.msra.mxu0 %v458
    %461 = vmatprep.subr.mxu0 0.0
    %462 = vmatpush1.msra.mxu0 0.0
    %463 = vmatprep.subr.mxu0 0.0
    %464 = vmatpush1.msra.mxu0 0.0
    %465 = vmatprep.subr.mxu0 0.0
    %466 = vmatpush1.msra.mxu0 0.0
    %467 = vmatprep.subr.mxu0 0.0
    %468 = vmatpush1.msra.mxu0 0.0
    %469 = vmatprep.subr.mxu0 0.0
    %470 = vmatpush1.msra.mxu0 0.0
    %471 = vmatprep.subr.mxu0 0.0
    %472 = vmatpush1.msra.mxu0 0.0
    %473 = vmatprep.subr.mxu0 0.0
    %474 = vmatpush1.msra.mxu0 0.0
    %475 = vmatprep.subr.mxu0 0.0
    %476 = vmatpush1.msra.mxu0 0.0
    %477 = vmatprep.subr.mxu0 0.0
    %478 = vmatpush1.msra.mxu0 0.0
    %479 = vmatprep.subr.mxu0 0.0
    %480 = vmatpush1.msra.mxu0 0.0
    %481 = vmatprep.subr.mxu0 0.0
    %482 = vmatpush1.msra.mxu0 0.0
    %483 = vmatprep.subr.mxu0 0.0
    %484 = vmatpush1.msra.mxu0 0.0
    %485 = vmatprep.subr.mxu0 0.0
    %486 = vmatpush1.msra.mxu0 0.0
    %487 = vmatprep.subr.mxu0 0.0
    %488 = vmatpush1.msra.mxu0 0.0
    %489 = vmatprep.subr.mxu0 0.0
    %490 = vmatpush1.msra.mxu0 0.0
    %491 = vmatprep.subr.mxu0 0.0
    %492 = vmatpush1.msra.mxu0 0.0
    %493 = vmatprep.subr.mxu0 0.0
    %494 = vmatpush1.msra.mxu0 0.0
    %495 = vmatprep.subr.mxu0 0.0
    %496 = vmatpush1.msra.mxu0 0.0
    %497 = vmatprep.subr.mxu0 0.0
    %498 = vmatpush1.msra.mxu0 0.0
    %499 = vmatprep.subr.mxu0 0.0
    %500 = vmatpush1.msra.mxu0 0.0
    %501 = vmatprep.subr.mxu0 0.0
    %502 = vmatpush1.msra.mxu0 0.0
    %503 = vmatprep.subr.mxu0 0.0
    %504 = vmatpush1.msra.mxu0 0.0
    %505 = vmatprep.subr.mxu0 0.0
    %506 = vmatpush1.msra.mxu0 0.0
    %507 = vmatprep.subr.mxu0 0.0
    %508 = vmatpush1.msra.mxu0 0.0
    %509 = vmatprep.subr.mxu0 0.0
    %510 = vmatpush1.msra.mxu0 0.0
    %511 = vmatprep.subr.mxu0 0.0
    %512 = vmatpush1.msra.mxu0 0.0
    %513 = vmatprep.subr.mxu0 0.0
    %514 = vmatpush1.msra.mxu0 0.0
    %515 = vmatprep.subr.mxu0 0.0
    %516 = vmatpush1.msra.mxu0 0.0
    %517 = vmatprep.subr.mxu0 0.0
    %518 = vmatpush1.msra.mxu0 0.0
    %519 = vmatprep.subr.mxu0 0.0
    %520 = vmatpush1.msra.mxu0 0.0
    %521 = vmatprep.subr.mxu0 0.0
    %522 = vmatpush1.msra.mxu0 0.0
    %523 = vmatprep.mubr.f32.mxu0 0.0
    %524 = vmatmul.mubr.f32.gmra.mrb[0].mxu0 %v370
    %v525 = vpop.f32.mrb[0].mxu0
    %v526 = vadd.f32 0.0, %v525
    %v527 = vpop.f32.mrb[0].mxu0
    %528 = vmatprep.mubr.f32.mxu0 0.0
    %529 = vmatmul.mubr.f32.gmra.mrb[0].mxu0 %v373
    %v530 = vpop.f32.mrb[0].mxu0
    %v531 = vadd.f32 0.0, %v530
    %v532 = vpop.f32.mrb[0].mxu0
    %533 = vdwg.mxu0
    %v534 = vadd.f32 %v456, %v526
    %v535 = vadd.f32 %v457, %v531
    %v536 = vld [vmem:[%s2 + $0x10] sm:$0xff]
    %537 = vmatprep.subr.mxu0 0.0
    %538 = vmatpush1.msra.mxu0 %v536
    %539 = vmatprep.subr.mxu0 0.0
    %540 = vmatpush1.msra.mxu0 0.0
    %541 = vmatprep.subr.mxu0 0.0
    %542 = vmatpush1.msra.mxu0 0.0
    %543 = vmatprep.subr.mxu0 0.0
    %544 = vmatpush1.msra.mxu0 0.0
    %545 = vmatprep.subr.mxu0 0.0
    %546 = vmatpush1.msra.mxu0 0.0
    %547 = vmatprep.subr.mxu0 0.0
    %548 = vmatpush1.msra.mxu0 0.0
    %549 = vmatprep.subr.mxu0 0.0
    %550 = vmatpush1.msra.mxu0 0.0
    %551 = vmatprep.subr.mxu0 0.0
    %552 = vmatpush1.msra.mxu0 0.0
    %553 = vmatprep.subr.mxu0 0.0
    %554 = vmatpush1.msra.mxu0 0.0
    %555 = vmatprep.subr.mxu0 0.0
    %556 = vmatpush1.msra.mxu0 0.0
    %557 = vmatprep.subr.mxu0 0.0
    %558 = vmatpush1.msra.mxu0 0.0
    %559 = vmatprep.subr.mxu0 0.0
    %560 = vmatpush1.msra.mxu0 0.0
    %561 = vmatprep.subr.mxu0 0.0
    %562 = vmatpush1.msra.mxu0 0.0
    %563 = vmatprep.subr.mxu0 0.0
    %564 = vmatpush1.msra.mxu0 0.0
    %565 = vmatprep.subr.mxu0 0.0
    %566 = vmatpush1.msra.mxu0 0.0
    %567 = vmatprep.subr.mxu0 0.0
    %568 = vmatpush1.msra.mxu0 0.0
    %569 = vmatprep.subr.mxu0 0.0
    %570 = vmatpush1.msra.mxu0 0.0
    %571 = vmatprep.subr.mxu0 0.0
    %572 = vmatpush1.msra.mxu0 0.0
    %573 = vmatprep.subr.mxu0 0.0
    %574 = vmatpush1.msra.mxu0 0.0
    %575 = vmatprep.subr.mxu0 0.0
    %576 = vmatpush1.msra.mxu0 0.0
    %577 = vmatprep.subr.mxu0 0.0
    %578 = vmatpush1.msra.mxu0 0.0
    %579 = vmatprep.subr.mxu0 0.0
    %580 = vmatpush1.msra.mxu0 0.0
    %581 = vmatprep.subr.mxu0 0.0
    %582 = vmatpush1.msra.mxu0 0.0
    %583 = vmatprep.subr.mxu0 0.0
    %584 = vmatpush1.msra.mxu0 0.0
    %585 = vmatprep.subr.mxu0 0.0
    %586 = vmatpush1.msra.mxu0 0.0
    %587 = vmatprep.subr.mxu0 0.0
    %588 = vmatpush1.msra.mxu0 0.0
    %589 = vmatprep.subr.mxu0 0.0
    %590 = vmatpush1.msra.mxu0 0.0
    %591 = vmatprep.subr.mxu0 0.0
    %592 = vmatpush1.msra.mxu0 0.0
    %593 = vmatprep.subr.mxu0 0.0
    %594 = vmatpush1.msra.mxu0 0.0
    %595 = vmatprep.subr.mxu0 0.0
    %596 = vmatpush1.msra.mxu0 0.0
    %597 = vmatprep.subr.mxu0 0.0
    %598 = vmatpush1.msra.mxu0 0.0
    %599 = vmatprep.subr.mxu0 0.0
    %600 = vmatpush1.msra.mxu0 0.0
    %601 = vmatprep.mubr.f32.mxu0 0.0
    %602 = vmatmul.mubr.f32.gmra.mrb[0].mxu0 %v370
    %v603 = vpop.f32.mrb[0].mxu0
    %v604 = vadd.f32 0.0, %v603
    %v605 = vpop.f32.mrb[0].mxu0
    %606 = vmatprep.mubr.f32.mxu0 0.0
    %607 = vmatmul.mubr.f32.gmra.mrb[0].mxu0 %v373
    %v608 = vpop.f32.mrb[0].mxu0
    %v609 = vadd.f32 0.0, %v608
    %v610 = vpop.f32.mrb[0].mxu0
    %611 = vdwg.mxu0
    %v612 = vrot.slane %v604, 2
    %v613 = vrot.slane %v609, 2
    %v614 = vsel %vm342, %v612, %v613
    %v615 = vsel %vm342, %v613, %v612
    %v616 = vmul.f32 %v614, %v347
    %v617 = vmul.f32 %v615, %v351
    %v618 = vadd.f32 %v534, %v616
    %v619 = vadd.f32 %v535, %v617
    %v620 = vlaneseq
    %v621 = vshrl.u32 %v620, 7
    %v622 = vsub.s32 1, %v621
    %v623 = vrot.slane %v26, %v622
    %v624 = vadd.f32 %v618, %v623
    %v625 = vadd.f32 %v619, %v623
    %v626 = vmax.f32 %v624, 0.0
    %v627 = vmax.f32 %v625, 0.0
    %v628 = vmax.f32 %v626, %v627
    %v630 = vrot.slane %v628, 4
    %v632 = vmax.f32 %v628, %v630
    %v634 = vrot.slane %v632, 2
    %v636 = vmax.f32 %v632, %v634
    %v637 = vld [vmem:[%s3] sm:$0xff]
    %v638 = vlaneseq
    %v639 = vshrl.u32 %v638, 7
    %v640 = vsub.s32 2, %v639
    %v641 = vrot.slane %v26, %v640
    %v643 = vsel %vm368, %v636, 0
    %645 = vmatprep.subr.mxu0 0.0
    %646 = vmatpush1.msra.mxu0 %v637
    %647 = vmatprep.subr.mxu0 0.0
    %648 = vmatpush1.msra.mxu0 0.0
    %649 = vmatprep.subr.mxu0 0.0
    %650 = vmatpush1.msra.mxu0 0.0
    %651 = vmatprep.subr.mxu0 0.0
    %652 = vmatpush1.msra.mxu0 0.0
    %653 = vmatprep.subr.mxu0 0.0
    %654 = vmatpush1.msra.mxu0 0.0
    %655 = vmatprep.subr.mxu0 0.0
    %656 = vmatpush1.msra.mxu0 0.0
    %657 = vmatprep.subr.mxu0 0.0
    %658 = vmatpush1.msra.mxu0 0.0
    %659 = vmatprep.subr.mxu0 0.0
    %660 = vmatpush1.msra.mxu0 0.0
    %661 = vmatprep.subr.mxu0 0.0
    %662 = vmatpush1.msra.mxu0 0.0
    %663 = vmatprep.subr.mxu0 0.0
    %664 = vmatpush1.msra.mxu0 0.0
    %665 = vmatprep.subr.mxu0 0.0
    %666 = vmatpush1.msra.mxu0 0.0
    %667 = vmatprep.subr.mxu0 0.0
    %668 = vmatpush1.msra.mxu0 0.0
    %669 = vmatprep.subr.mxu0 0.0
    %670 = vmatpush1.msra.mxu0 0.0
    %671 = vmatprep.subr.mxu0 0.0
    %672 = vmatpush1.msra.mxu0 0.0
    %673 = vmatprep.subr.mxu0 0.0
    %674 = vmatpush1.msra.mxu0 0.0
    %675 = vmatprep.subr.mxu0 0.0
    %676 = vmatpush1.msra.mxu0 0.0
    %677 = vmatprep.subr.mxu0 0.0
    %678 = vmatpush1.msra.mxu0 0.0
    %679 = vmatprep.subr.mxu0 0.0
    %680 = vmatpush1.msra.mxu0 0.0
    %681 = vmatprep.subr.mxu0 0.0
    %682 = vmatpush1.msra.mxu0 0.0
    %683 = vmatprep.subr.mxu0 0.0
    %684 = vmatpush1.msra.mxu0 0.0
    %685 = vmatprep.subr.mxu0 0.0
    %686 = vmatpush1.msra.mxu0 0.0
    %687 = vmatprep.subr.mxu0 0.0
    %688 = vmatpush1.msra.mxu0 0.0
    %689 = vmatprep.subr.mxu0 0.0
    %690 = vmatpush1.msra.mxu0 0.0
    %691 = vmatprep.subr.mxu0 0.0
    %692 = vmatpush1.msra.mxu0 0.0
    %693 = vmatprep.subr.mxu0 0.0
    %694 = vmatpush1.msra.mxu0 0.0
    %695 = vmatprep.subr.mxu0 0.0
    %696 = vmatpush1.msra.mxu0 0.0
    %697 = vmatprep.subr.mxu0 0.0
    %698 = vmatpush1.msra.mxu0 0.0
    %699 = vmatprep.subr.mxu0 0.0
    %700 = vmatpush1.msra.mxu0 0.0
    %701 = vmatprep.subr.mxu0 0.0
    %702 = vmatpush1.msra.mxu0 0.0
    %703 = vmatprep.subr.mxu0 0.0
    %704 = vmatpush1.msra.mxu0 0.0
    %705 = vmatprep.subr.mxu0 0.0
    %706 = vmatpush1.msra.mxu0 0.0
    %707 = vmatprep.subr.mxu0 0.0
    %708 = vmatpush1.msra.mxu0 0.0
    %709 = vmatprep.mubr.f32.mxu0 0.0
    %710 = vmatmul.mubr.f32.gmra.mrb[0].mxu0 %v643
    %v711 = vpop.f32.mrb[0].mxu0
    %v712 = vadd.f32 %v641, %v711
    %v713 = vpop.f32.mrb[0].mxu0
    %714 = vdwg.mxu0
    %vm715 = vcmask 25600
    %v716 = vsel %vm715, %v712, -inf
    %717 = vmax.xlane.f32.xlu0 %v716
    %v718 = vpop.xlane.xlu0 %717
    %v719 = vsub.f32 %v712, %v718
    %v720 = vmul.f32 %v719, 1.442695
    %v721 = vpow.pop %v720
    %v722 = vsel %vm715, %v721, 0.0
    %723 = vadd.xlane.f32.xlu0 %v722
    %v724 = vpop.xlane.xlu0 %723
    %v725 = vrcp.pop %v724
    %v726 = vmul.f32 %v721, %v725
    %727 = vst.msk [vmem:[#allocation2] sm:$0x3] %vm715, %v726
    // Predicated region
    $region26: #{cnn_forward.1} parent=1 // pred_check
      _
    $region27: #{cnn_forward.1} parent=1 // pred_check_branch
      %729 = sbr.rel (0) target = $region29
    $region28: #{cnn_forward.1} parent=1 // pred_region
      %s731 = ssub.s32 32, 32
      %732 = vsyncadd [#allocation3], %s731
      %s734 = sshll.u32 [#allocation2], 4
      %s735 = int_to_ptr.vmem [resolvable:$true] %s734
      %737 = dma.vmem_to_hbm [thread:$0]  %s735, 32, %s6, [#allocation3]
    $region29: #{cnn_forward.1} parent=1 // pred_fallthru
      _
    // Predicated region
    $region30: #{cnn_forward.1} parent=1 // pred_check
      _
    $region31: #{cnn_forward.1} parent=1 // pred_check_branch
      %739 = sbr.rel (0) target = $region33
    $region32: #{cnn_forward.1} parent=1 // pred_region
      %740 = dma.done [#allocation3], 32
    $region33: #{cnn_forward.1} parent=1 // pred_fallthru
      _
    %741 = vsyncpa [#allocation3], 1

</llo_original>
